<compile_context>
chip_gen: v5e
topology: v5e:2x2
jax: 0.10.0
libtpu: 0.0.40
codegen_flags: <defaults>
</compile_context>

<pallas_src>
import jax
import jax.numpy as jnp
from jax.experimental import pallas as pl
from jax.experimental.pallas import tpu as pltpu


HIDDEN_DIM = 32
INPUT_SIZE = 1
OUTPUT_SIZE = 1
N_LAYERS = 1


def rnn_kernel(x_ref, h0_ref, pack_ref, r_out_ref, y_ref):
    """Elman RNN (tanh) over the full sequence, fused with the final Linear.

    x_ref    : (T, B, 1)     input sequence (seq-major)
    h0_ref   : (B, H)        initial hidden state (layer 0)
    pack_ref : (H + 4, H)    rows [0:H]   = W_hh^T
                             row  H       = W_ih^T   (I == 1)
                             row  H + 1   = b_ih + b_hh
                             row  H + 2   = W_fc row (O == 1)
                             row  H + 3   = b_fc broadcast across lanes
    r_out_ref: (T, B, H)     all hidden states, seq-major (wrapper transposes)
    y_ref    : (T, B)        fc(r_out), seq-major (wrapper transposes/reshapes)
    """
    seq = x_ref.shape[0]
    hidden = pack_ref.shape[1]

    # Unpack the single parameter slab (static slices, loaded once at entry).
    whh = pack_ref[0:hidden, :]                       # (H, H)  W_hh^T
    wih = pack_ref[hidden:hidden + 1, :]              # (1, H)  W_ih^T row
    bias = pack_ref[hidden + 1:hidden + 2, :]         # (1, H)  b_ih + b_hh
    wfc = pack_ref[hidden + 2:hidden + 3, :]          # (1, H)  W_fc row
    bfc = pack_ref[hidden + 3:hidden + 4, 0:1]        # (1, 1)  b_fc

    # Precompute the input contribution + fused bias OFF the recurrence:
    # K == 1 means this is an outer product -> pure VPU broadcast multiply.
    xw = x_ref[...] * wih.reshape(1, 1, hidden) + bias.reshape(1, 1, hidden)  # (T,B,H)

    # Sequential recurrence — statically unrolled (seq is small & static).
    # Only h @ W_hh (MXU) + tanh (EUP) remain on the serial chain.
    h = h0_ref[...]                                   # (B, H)
    hs = []
    for t in range(seq):
        h = jnp.tanh(
            xw[t] + jnp.dot(h, whh, preferred_element_type=jnp.float32)
        )
        hs.append(h)

    # Seq-major stack: leading-index placement, no cross-sublane relayout.
    r_out_tb = jnp.stack(hs, axis=0)                  # (T, B, H)
    r_out_ref[...] = r_out_tb                         # single dense store

    # Fused FC, hoisted out of the loop.  O == 1 -> VPU multiply + lane
    # reduction; emitted as one (T, B) tile (single store).
    y_ref[...] = jnp.sum(r_out_tb * wfc.reshape(1, 1, hidden), axis=-1) + bfc


def pack_params(params):
    """Pack all weights/biases into one (H+4, H) f32 slab (built once, reused)."""
    w_ih, w_hh, b_ih, b_hh, w_fc, b_fc = params
    hidden_dim = w_hh.shape[0]
    return jnp.concatenate(
        [
            w_hh.T,                                                # (H, H)
            w_ih.T.reshape(1, hidden_dim),                         # (1, H)
            (b_ih + b_hh).reshape(1, hidden_dim),                  # (1, H)
            w_fc.reshape(1, hidden_dim),                           # (1, H)
            jnp.broadcast_to(b_fc.reshape(1, 1), (1, hidden_dim)), # (1, H)
        ],
        axis=0,
    ).astype(jnp.float32)


@jax.jit
def rnn_forward(x, hidden, packed_params):
    """Mirrors RNN.forward(x, hidden) -> (output, hidden, check_r_out, check_r_out_resize)."""
    batch, seq, _ = x.shape
    hidden_dim = packed_params.shape[1]

    h0 = hidden[0]                                   # (B, H)   (n_layers == 1)
    x_tb = jnp.transpose(x, (1, 0, 2))               # (T, B, I) seq-major

    vmem = pl.BlockSpec(memory_space=pltpu.MemorySpace.VMEM)
    r_out_tb, y_tb = pl.pallas_call(
        rnn_kernel,
        out_shape=(
            jax.ShapeDtypeStruct((seq, batch, hidden_dim), jnp.float32),
            jax.ShapeDtypeStruct((seq, batch), jnp.float32),
        ),
        in_specs=[vmem, vmem, vmem],
        out_specs=(vmem, vmem),
    )(x_tb, h0, packed_params)

    r_out = jnp.transpose(r_out_tb, (1, 0, 2))       # (B, T, H)
    output = jnp.transpose(y_tb, (1, 0)).reshape(-1, OUTPUT_SIZE)   # (B*T, 1)
    hidden_out = r_out_tb[-1][None]                  # (n_layers, B, H) = final step
    check_r_out = r_out                              # (B, T, H)
    check_r_out_resize = r_out.reshape(-1, hidden_dim)
    return output, hidden_out, check_r_out, check_r_out_resize


def reference_forward(x, hidden, params):
    """Pure-JAX reference reproducing torch nn.RNN(batch_first=True) + Linear."""
    w_ih, w_hh, b_ih, b_hh, w_fc, b_fc = params
    h = hidden[0]
    outs = []
    for t in range(x.shape[1]):
        h = jnp.tanh(x[:, t, :] @ w_ih.T + b_ih + h @ w_hh.T + b_hh)
        outs.append(h)
    r_out = jnp.stack(outs, axis=1)
    out = r_out.reshape(-1, r_out.shape[-1]) @ w_fc.T + b_fc
    return out, h[None], r_out, r_out.reshape(-1, r_out.shape[-1])


def init_params(key):
    """Deterministic init matching PyTorch shapes: U(-1/sqrt(H), 1/sqrt(H))."""
    k = 1.0 / jnp.sqrt(jnp.float32(HIDDEN_DIM))
    keys = jax.random.split(key, 6)
    w_ih = jax.random.uniform(keys[0], (HIDDEN_DIM, INPUT_SIZE), jnp.float32, -k, k)
    w_hh = jax.random.uniform(keys[1], (HIDDEN_DIM, HIDDEN_DIM), jnp.float32, -k, k)
    b_ih = jax.random.uniform(keys[2], (HIDDEN_DIM,), jnp.float32, -k, k)
    b_hh = jax.random.uniform(keys[3], (HIDDEN_DIM,), jnp.float32, -k, k)
    w_fc = jax.random.uniform(keys[4], (OUTPUT_SIZE, HIDDEN_DIM), jnp.float32, -k, k)
    b_fc = jax.random.uniform(keys[5], (OUTPUT_SIZE,), jnp.float32, -k, k)
    return (w_ih, w_hh, b_ih, b_hh, w_fc, b_fc)


if __name__ == "__main__":
    key = jax.random.PRNGKey(0)
    k_param, k_x = jax.random.split(key)

    batch, seq = 2, 8
    params = init_params(k_param)
    packed = pack_params(params)     # built once; amortized across calls

    # sin-wave style input, (B, T, 1), like the original script's data
    t_steps = jnp.linspace(0.0, jnp.pi, seq + 1)[:-1]
    base = jnp.sin(t_steps).reshape(1, seq, 1)
    noise = 0.01 * jax.random.normal(k_x, (batch, seq, INPUT_SIZE), jnp.float32)
    x = jnp.broadcast_to(base, (batch, seq, INPUT_SIZE)).astype(jnp.float32) + noise

    hidden0 = jnp.zeros((N_LAYERS, batch, HIDDEN_DIM), jnp.float32)

    output, hidden, check_r_out, check_r_out_resize = jax.block_until_ready(
        rnn_forward(x, hidden0, packed)
    )

    # Correctness check against a pure-JAX reference of the PyTorch semantics.
    ref_out, ref_hidden, ref_r_out, ref_r_out_rs = reference_forward(x, hidden0, params)
    assert output.shape == (batch * seq, OUTPUT_SIZE)
    assert hidden.shape == (N_LAYERS, batch, HIDDEN_DIM)
    assert check_r_out.shape == (batch, seq, HIDDEN_DIM)
    assert check_r_out_resize.shape == (batch * seq, HIDDEN_DIM)
    assert jnp.allclose(output, ref_out, atol=1e-5)
    assert jnp.allclose(hidden, ref_hidden, atol=1e-5)
    assert jnp.allclose(check_r_out, ref_r_out, atol=1e-5)
    assert jnp.allclose(check_r_out_resize, ref_r_out_rs, atol=1e-5)

    print("KERNEL_OK")
</pallas_src>

<mosaic_0001>
module attributes {stable_mosaic.version = 11 : i64} {
  func.func @rnn_kernel(%arg0: memref<8x2x1xf32, #tpu.memory_space<vmem>>, %arg1: memref<2x32xf32, #tpu.memory_space<vmem>>, %arg2: memref<36x32xf32, #tpu.memory_space<vmem>>, %arg3: memref<8x2x32xf32, #tpu.memory_space<vmem>>, %arg4: memref<8x2xf32, #tpu.memory_space<vmem>>) attributes {dimension_semantics = [], scalar_prefetch = 0 : i64, scratch_operands = 0 : i64, tpu.core_type = #tpu.core_type<tc>} {
    %c0 = arith.constant 0 : index
    %c0_0 = arith.constant 0 : index
    %0 = vector.load %arg2[%c0, %c0_0] : memref<36x32xf32, #tpu.memory_space<vmem>>, vector<32x32xf32>
    %c32 = arith.constant 32 : index
    %c0_1 = arith.constant 0 : index
    %1 = vector.load %arg2[%c32, %c0_1] : memref<36x32xf32, #tpu.memory_space<vmem>>, vector<1x32xf32>
    %c33 = arith.constant 33 : index
    %c0_2 = arith.constant 0 : index
    %2 = vector.load %arg2[%c33, %c0_2] : memref<36x32xf32, #tpu.memory_space<vmem>>, vector<1x32xf32>
    %c34 = arith.constant 34 : index
    %c0_3 = arith.constant 0 : index
    %3 = vector.load %arg2[%c34, %c0_3] : memref<36x32xf32, #tpu.memory_space<vmem>>, vector<1x32xf32>
    %c35 = arith.constant 35 : index
    %c0_4 = arith.constant 0 : index
    %4 = vector.load %arg2[%c35, %c0_4] : memref<36x32xf32, #tpu.memory_space<vmem>>, vector<1x1xf32>
    %c0_5 = arith.constant 0 : index
    %c0_6 = arith.constant 0 : index
    %c0_7 = arith.constant 0 : index
    %5 = vector.load %arg0[%c0_5, %c0_6, %c0_7] : memref<8x2x1xf32, #tpu.memory_space<vmem>>, vector<8x2x1xf32>
    %6 = vector.shape_cast %1 : vector<1x32xf32> to vector<1x1x32xf32>
    %7 = vector.broadcast %5 : vector<8x2x1xf32> to vector<8x2x32xf32>
    %8 = vector.broadcast %6 : vector<1x1x32xf32> to vector<8x2x32xf32>
    %9 = arith.mulf %7, %8 : vector<8x2x32xf32>
    %10 = vector.shape_cast %2 : vector<1x32xf32> to vector<1x1x32xf32>
    %11 = vector.broadcast %10 : vector<1x1x32xf32> to vector<8x2x32xf32>
    %12 = arith.addf %9, %11 : vector<8x2x32xf32>
    %c0_8 = arith.constant 0 : index
    %c0_9 = arith.constant 0 : index
    %13 = vector.load %arg1[%c0_8, %c0_9] : memref<2x32xf32, #tpu.memory_space<vmem>>, vector<2x32xf32>
    %14 = vector.extract_strided_slice %12 {offsets = [0, 0, 0], sizes = [1, 2, 32], strides = [1, 1, 1]} : vector<8x2x32xf32> to vector<1x2x32xf32>
    %15 = vector.shape_cast %14 : vector<1x2x32xf32> to vector<2x32xf32>
    %cst = arith.constant dense<0.000000e+00> : vector<2x32xf32>
    %16 = tpu.matmul %13, %0, %cst {dimension_numbers = #tpu.dot_dimension_numbers<[1], [0], [0], [1], [0, 0, 1, 1], [], []>} : vector<2x32xf32>, vector<32x32xf32>, vector<2x32xf32> -> vector<2x32xf32>
    %17 = arith.addf %15, %16 : vector<2x32xf32>
    %18 = math.tanh %17 : vector<2x32xf32>
    %19 = vector.extract_strided_slice %12 {offsets = [1, 0, 0], sizes = [1, 2, 32], strides = [1, 1, 1]} : vector<8x2x32xf32> to vector<1x2x32xf32>
    %20 = vector.shape_cast %19 : vector<1x2x32xf32> to vector<2x32xf32>
    %cst_10 = arith.constant dense<0.000000e+00> : vector<2x32xf32>
    %21 = tpu.matmul %18, %0, %cst_10 {dimension_numbers = #tpu.dot_dimension_numbers<[1], [0], [0], [1], [0, 0, 1, 1], [], []>} : vector<2x32xf32>, vector<32x32xf32>, vector<2x32xf32> -> vector<2x32xf32>
    %22 = arith.addf %20, %21 : vector<2x32xf32>
    %23 = math.tanh %22 : vector<2x32xf32>
    %24 = vector.extract_strided_slice %12 {offsets = [2, 0, 0], sizes = [1, 2, 32], strides = [1, 1, 1]} : vector<8x2x32xf32> to vector<1x2x32xf32>
    %25 = vector.shape_cast %24 : vector<1x2x32xf32> to vector<2x32xf32>
    %cst_11 = arith.constant dense<0.000000e+00> : vector<2x32xf32>
    %26 = tpu.matmul %23, %0, %cst_11 {dimension_numbers = #tpu.dot_dimension_numbers<[1], [0], [0], [1], [0, 0, 1, 1], [], []>} : vector<2x32xf32>, vector<32x32xf32>, vector<2x32xf32> -> vector<2x32xf32>
    %27 = arith.addf %25, %26 : vector<2x32xf32>
    %28 = math.tanh %27 : vector<2x32xf32>
    %29 = vector.extract_strided_slice %12 {offsets = [3, 0, 0], sizes = [1, 2, 32], strides = [1, 1, 1]} : vector<8x2x32xf32> to vector<1x2x32xf32>
    %30 = vector.shape_cast %29 : vector<1x2x32xf32> to vector<2x32xf32>
    %cst_12 = arith.constant dense<0.000000e+00> : vector<2x32xf32>
    %31 = tpu.matmul %28, %0, %cst_12 {dimension_numbers = #tpu.dot_dimension_numbers<[1], [0], [0], [1], [0, 0, 1, 1], [], []>} : vector<2x32xf32>, vector<32x32xf32>, vector<2x32xf32> -> vector<2x32xf32>
    %32 = arith.addf %30, %31 : vector<2x32xf32>
    %33 = math.tanh %32 : vector<2x32xf32>
    %34 = vector.extract_strided_slice %12 {offsets = [4, 0, 0], sizes = [1, 2, 32], strides = [1, 1, 1]} : vector<8x2x32xf32> to vector<1x2x32xf32>
    %35 = vector.shape_cast %34 : vector<1x2x32xf32> to vector<2x32xf32>
    %cst_13 = arith.constant dense<0.000000e+00> : vector<2x32xf32>
    %36 = tpu.matmul %33, %0, %cst_13 {dimension_numbers = #tpu.dot_dimension_numbers<[1], [0], [0], [1], [0, 0, 1, 1], [], []>} : vector<2x32xf32>, vector<32x32xf32>, vector<2x32xf32> -> vector<2x32xf32>
    %37 = arith.addf %35, %36 : vector<2x32xf32>
    %38 = math.tanh %37 : vector<2x32xf32>
    %39 = vector.extract_strided_slice %12 {offsets = [5, 0, 0], sizes = [1, 2, 32], strides = [1, 1, 1]} : vector<8x2x32xf32> to vector<1x2x32xf32>
    %40 = vector.shape_cast %39 : vector<1x2x32xf32> to vector<2x32xf32>
    %cst_14 = arith.constant dense<0.000000e+00> : vector<2x32xf32>
    %41 = tpu.matmul %38, %0, %cst_14 {dimension_numbers = #tpu.dot_dimension_numbers<[1], [0], [0], [1], [0, 0, 1, 1], [], []>} : vector<2x32xf32>, vector<32x32xf32>, vector<2x32xf32> -> vector<2x32xf32>
    %42 = arith.addf %40, %41 : vector<2x32xf32>
    %43 = math.tanh %42 : vector<2x32xf32>
    %44 = vector.extract_strided_slice %12 {offsets = [6, 0, 0], sizes = [1, 2, 32], strides = [1, 1, 1]} : vector<8x2x32xf32> to vector<1x2x32xf32>
    %45 = vector.shape_cast %44 : vector<1x2x32xf32> to vector<2x32xf32>
    %cst_15 = arith.constant dense<0.000000e+00> : vector<2x32xf32>
    %46 = tpu.matmul %43, %0, %cst_15 {dimension_numbers = #tpu.dot_dimension_numbers<[1], [0], [0], [1], [0, 0, 1, 1], [], []>} : vector<2x32xf32>, vector<32x32xf32>, vector<2x32xf32> -> vector<2x32xf32>
    %47 = arith.addf %45, %46 : vector<2x32xf32>
    %48 = math.tanh %47 : vector<2x32xf32>
    %49 = vector.extract_strided_slice %12 {offsets = [7, 0, 0], sizes = [1, 2, 32], strides = [1, 1, 1]} : vector<8x2x32xf32> to vector<1x2x32xf32>
    %50 = vector.shape_cast %49 : vector<1x2x32xf32> to vector<2x32xf32>
    %cst_16 = arith.constant dense<0.000000e+00> : vector<2x32xf32>
    %51 = tpu.matmul %48, %0, %cst_16 {dimension_numbers = #tpu.dot_dimension_numbers<[1], [0], [0], [1], [0, 0, 1, 1], [], []>} : vector<2x32xf32>, vector<32x32xf32>, vector<2x32xf32> -> vector<2x32xf32>
    %52 = arith.addf %50, %51 : vector<2x32xf32>
    %53 = math.tanh %52 : vector<2x32xf32>
    %54 = vector.shape_cast %18 : vector<2x32xf32> to vector<1x2x32xf32>
    %55 = vector.shape_cast %23 : vector<2x32xf32> to vector<1x2x32xf32>
    %56 = vector.shape_cast %28 : vector<2x32xf32> to vector<1x2x32xf32>
    %57 = vector.shape_cast %33 : vector<2x32xf32> to vector<1x2x32xf32>
    %58 = vector.shape_cast %38 : vector<2x32xf32> to vector<1x2x32xf32>
    %59 = vector.shape_cast %43 : vector<2x32xf32> to vector<1x2x32xf32>
    %60 = vector.shape_cast %48 : vector<2x32xf32> to vector<1x2x32xf32>
    %61 = vector.shape_cast %53 : vector<2x32xf32> to vector<1x2x32xf32>
    %62 = tpu.concatenate %54, %55, %56, %57, %58, %59, %60, %61 in 0 : vector<1x2x32xf32>, vector<1x2x32xf32>, vector<1x2x32xf32>, vector<1x2x32xf32>, vector<1x2x32xf32>, vector<1x2x32xf32>, vector<1x2x32xf32>, vector<1x2x32xf32> -> vector<8x2x32xf32>
    %c0_17 = arith.constant 0 : index
    %c0_18 = arith.constant 0 : index
    %c0_19 = arith.constant 0 : index
    %63 = vector.load %arg3[%c0_17, %c0_18, %c0_19] : memref<8x2x32xf32, #tpu.memory_space<vmem>>, vector<8x2x32xf32>
    tpu.vector_store %arg3[%c0_17, %c0_18, %c0_19], %62 {strides = array<i32>} : memref<8x2x32xf32, #tpu.memory_space<vmem>>, vector<8x2x32xf32>,
    %64 = vector.shape_cast %3 : vector<1x32xf32> to vector<1x1x32xf32>
    %65 = vector.broadcast %64 : vector<1x1x32xf32> to vector<8x2x32xf32>
    %66 = arith.mulf %62, %65 : vector<8x2x32xf32>
    %cst_20 = arith.constant dense<0.000000e+00> : vector<8x2xf32>
    %67 = vector.multi_reduction <add>, %66, %cst_20 [2] : vector<8x2x32xf32> to vector<8x2xf32>
    %68 = vector.broadcast %4 : vector<1x1xf32> to vector<8x2xf32>
    %69 = arith.addf %67, %68 : vector<8x2xf32>
    %c0_21 = arith.constant 0 : index
    %c0_22 = arith.constant 0 : index
    %70 = vector.load %arg4[%c0_21, %c0_22] : memref<8x2xf32, #tpu.memory_space<vmem>>, vector<8x2xf32>
    tpu.vector_store %arg4[%c0_21, %c0_22], %69 {strides = array<i32>} : memref<8x2xf32, #tpu.memory_space<vmem>>, vector<8x2xf32>,
    return
  }
}

</mosaic_0001>

<llo_original>
// kernel: rnn_forward.1
$region0: #{rnn_forward.1}
  #allocation0 [shape = 'u32[]', space=smem, size = 0x4, offset = 0x4, fixed_abs, tag = 'smem constant byte address 0x4 - core index']
  #allocation1 [shape = 'u32[72,128]{1,0:T(1,128)}', space=vmem, size = 0x9000, scoped, tag = 'internal scratch']
  %s0 = inlined_call_operand.vmem [shape: f32[8,2,1], index: 0, kind: input, shape index: {}]
  %s1 = inlined_call_operand.vmem [shape: f32[2,32], index: 1, kind: input, shape index: {}]
  %s2 = inlined_call_operand.vmem [shape: f32[36,32], index: 2, kind: input, shape index: {}]
  %s3 = inlined_call_operand.vmem [shape: f32[8,2,32], index: 3, kind: output, shape index: {0}]
  %s4 = inlined_call_operand.vmem [shape: f32[8,2], index: 4, kind: output, shape index: {1}]
  %5 = xla_tuple %s3, %s4
  %s6 = sld [smem:[#allocation0]]
  $region30: #{rnn_forward.1} parent=0
    _
  %s8 = ssub.s32 1, %s6
  %s9 = scalar_select 0, %s8, %s6
  // Predicated region
  $region2: #{rnn_forward.1} parent=0 // pred_check
    _
  $region3: #{rnn_forward.1} parent=0 // pred_check_branch
    %11 = sbr.rel (0) target = $region5
  $region4: #{rnn_forward.1} parent=0 // pred_region
    _
  $region5: #{rnn_forward.1} parent=0 // pred_fallthru
    _
  // Predicated region
  $region6: #{rnn_forward.1} parent=0 // pred_check
    _
  $region7: #{rnn_forward.1} parent=0 // pred_check_branch
    %13 = sbr.rel (0) target = $region9
  $region8: #{rnn_forward.1} parent=0 // pred_region
    _
  $region9: #{rnn_forward.1} parent=0 // pred_fallthru
    _
  // Predicated region
  $region10: #{rnn_forward.1} parent=0 // pred_check
    _
  $region11: #{rnn_forward.1} parent=0 // pred_check_branch
    %15 = sbr.rel (0) target = $region13
  $region12: #{rnn_forward.1} parent=0 // pred_region
    _
  $region13: #{rnn_forward.1} parent=0 // pred_fallthru
    _
  %v16 = vld [vmem:[%s2] sm:$0xff]
  %v17 = vld [vmem:[%s2 + $0x8] sm:$0xff]
  %v18 = vld [vmem:[%s2 + $0x10] sm:$0xff]
  %v19 = vld [vmem:[%s2 + $0x18] sm:$0xff]
  %v20 = vld [vmem:[%s2 + $0x20] sm:$0x1]
  %v21 = vld [vmem:[%s2 + $0x21] sm:$0x1]
  %v22 = vld [vmem:[%s2 + $0x22] sm:$0x1]
  %v23 = vld [vmem:[%s2 + $0x23] sm:$0x1]
  %v24 = vld [vmem:[%s0] sm:$0x3]
  %v25 = vld [vmem:[%s0 + $0x2] sm:$0x3]
  %v26 = vld [vmem:[%s0 + $0x4] sm:$0x3]
  %v27 = vld [vmem:[%s0 + $0x6] sm:$0x3]
  %v28 = vld [vmem:[%s0 + $0x8] sm:$0x3]
  %v29 = vld [vmem:[%s0 + $0xa] sm:$0x3]
  %v30 = vld [vmem:[%s0 + $0xc] sm:$0x3]
  %v31 = vld [vmem:[%s0 + $0xe] sm:$0x3]
  %33 = vset.pattern.permute.xlu0 0
  %34 = vperm.xlu0 %33, %v24
  %v35 = vpop.permute.xlu0 %34
  %38 = vset.pattern.permute.xlu0 0
  %39 = vperm.xlu0 %38, %v25
  %v40 = vpop.permute.xlu0 %39
  %43 = vset.pattern.permute.xlu0 0
  %44 = vperm.xlu0 %43, %v26
  %v45 = vpop.permute.xlu0 %44
  %48 = vset.pattern.permute.xlu0 0
  %49 = vperm.xlu0 %48, %v27
  %v50 = vpop.permute.xlu0 %49
  %53 = vset.pattern.permute.xlu0 0
  %54 = vperm.xlu0 %53, %v28
  %v55 = vpop.permute.xlu0 %54
  %58 = vset.pattern.permute.xlu0 0
  %59 = vperm.xlu0 %58, %v29
  %v60 = vpop.permute.xlu0 %59
  %63 = vset.pattern.permute.xlu0 0
  %64 = vperm.xlu0 %63, %v30
  %v65 = vpop.permute.xlu0 %64
  %68 = vset.pattern.permute.xlu0 0
  %69 = vperm.xlu0 %68, %v31
  %v70 = vpop.permute.xlu0 %69
  %v72 = vperm.slane %v20, 0
  %v73 = vmul.f32 %v35, %v72
  %v74 = vmul.f32 %v40, %v72
  %v75 = vmul.f32 %v45, %v72
  %v76 = vmul.f32 %v50, %v72
  %v77 = vmul.f32 %v55, %v72
  %v78 = vmul.f32 %v60, %v72
  %v79 = vmul.f32 %v65, %v72
  %v80 = vmul.f32 %v70, %v72
  %v81 = vperm.slane %v21, 0
  %v82 = vadd.f32 %v73, %v81
  %v83 = vadd.f32 %v74, %v81
  %v84 = vadd.f32 %v75, %v81
  %v85 = vadd.f32 %v76, %v81
  %v86 = vadd.f32 %v77, %v81
  %v87 = vadd.f32 %v78, %v81
  %v88 = vadd.f32 %v79, %v81
  %v89 = vadd.f32 %v80, %v81
  %v90 = vld [vmem:[%s1] sm:$0x3]
  %vm91 = vcmask 261120
  %v93 = vsel %vm91, %v90, 0
  %95 = vmatpush.msra.mxu0 0.0
  %96 = vmatpush.msra.mxu0 0.0
  %97 = vmatpush.msra.mxu0 0.0
  %98 = vmatpush.msra.mxu0 0.0
  %99 = vmatpush.msra.mxu0 0.0
  %100 = vmatpush.msra.mxu0 0.0
  %101 = vmatpush.msra.mxu0 0.0
  %102 = vmatpush.msra.mxu0 0.0
  %103 = vmatpush.msra.mxu0 0.0
  %104 = vmatpush.msra.mxu0 0.0
  %105 = vmatpush.msra.mxu0 0.0
  %106 = vmatpush.msra.mxu0 0.0
  %107 = vmatpush.msra.mxu0 %v19
  %108 = vmatpush.msra.mxu0 %v18
  %109 = vmatpush.msra.mxu0 %v17
  %110 = vmatpush.msra.mxu0 %v16
  %111 = vmatmul.f32.gmra.mxu0 %v93
  %v112 = vpop.f32.mrf.mxu0
  %v113 = vadd.f32 0.0, %v112
  %114 = vdwg.mxu0
  %v115 = vadd.f32 %v82, %v113
  %v116 = vtanh.pop %v115
  %v118 = vsel %vm91, %v116, 0
  %120 = vmatpush.msra.mxu0 0.0
  %121 = vmatpush.msra.mxu0 0.0
  %122 = vmatpush.msra.mxu0 0.0
  %123 = vmatpush.msra.mxu0 0.0
  %124 = vmatpush.msra.mxu0 0.0
  %125 = vmatpush.msra.mxu0 0.0
  %126 = vmatpush.msra.mxu0 0.0
  %127 = vmatpush.msra.mxu0 0.0
  %128 = vmatpush.msra.mxu0 0.0
  %129 = vmatpush.msra.mxu0 0.0
  %130 = vmatpush.msra.mxu0 0.0
  %131 = vmatpush.msra.mxu0 0.0
  %132 = vmatpush.msra.mxu0 %v19
  %133 = vmatpush.msra.mxu0 %v18
  %134 = vmatpush.msra.mxu0 %v17
  %135 = vmatpush.msra.mxu0 %v16
  %136 = vmatmul.f32.gmra.mxu0 %v118
  %v137 = vpop.f32.mrf.mxu0
  %v138 = vadd.f32 0.0, %v137
  %139 = vdwg.mxu0
  %v140 = vadd.f32 %v83, %v138
  %v141 = vtanh.pop %v140
  %v143 = vsel %vm91, %v141, 0
  %145 = vmatpush.msra.mxu0 0.0
  %146 = vmatpush.msra.mxu0 0.0
  %147 = vmatpush.msra.mxu0 0.0
  %148 = vmatpush.msra.mxu0 0.0
  %149 = vmatpush.msra.mxu0 0.0
  %150 = vmatpush.msra.mxu0 0.0
  %151 = vmatpush.msra.mxu0 0.0
  %152 = vmatpush.msra.mxu0 0.0
  %153 = vmatpush.msra.mxu0 0.0
  %154 = vmatpush.msra.mxu0 0.0
  %155 = vmatpush.msra.mxu0 0.0
  %156 = vmatpush.msra.mxu0 0.0
  %157 = vmatpush.msra.mxu0 %v19
  %158 = vmatpush.msra.mxu0 %v18
  %159 = vmatpush.msra.mxu0 %v17
  %160 = vmatpush.msra.mxu0 %v16
  %161 = vmatmul.f32.gmra.mxu0 %v143
  %v162 = vpop.f32.mrf.mxu0
  %v163 = vadd.f32 0.0, %v162
  %164 = vdwg.mxu0
  %v165 = vadd.f32 %v84, %v163
  %v166 = vtanh.pop %v165
  %v168 = vsel %vm91, %v166, 0
  %170 = vmatpush.msra.mxu0 0.0
  %171 = vmatpush.msra.mxu0 0.0
  %172 = vmatpush.msra.mxu0 0.0
  %173 = vmatpush.msra.mxu0 0.0
  %174 = vmatpush.msra.mxu0 0.0
  %175 = vmatpush.msra.mxu0 0.0
  %176 = vmatpush.msra.mxu0 0.0
  %177 = vmatpush.msra.mxu0 0.0
  %178 = vmatpush.msra.mxu0 0.0
  %179 = vmatpush.msra.mxu0 0.0
  %180 = vmatpush.msra.mxu0 0.0
  %181 = vmatpush.msra.mxu0 0.0
  %182 = vmatpush.msra.mxu0 %v19
  %183 = vmatpush.msra.mxu0 %v18
  %184 = vmatpush.msra.mxu0 %v17
  %185 = vmatpush.msra.mxu0 %v16
  %186 = vmatmul.f32.gmra.mxu0 %v168
  %v187 = vpop.f32.mrf.mxu0
  %v188 = vadd.f32 0.0, %v187
  %189 = vdwg.mxu0
  %v190 = vadd.f32 %v85, %v188
  %v191 = vtanh.pop %v190
  %v193 = vsel %vm91, %v191, 0
  %195 = vmatpush.msra.mxu0 0.0
  %196 = vmatpush.msra.mxu0 0.0
  %197 = vmatpush.msra.mxu0 0.0
  %198 = vmatpush.msra.mxu0 0.0
  %199 = vmatpush.msra.mxu0 0.0
  %200 = vmatpush.msra.mxu0 0.0
  %201 = vmatpush.msra.mxu0 0.0
  %202 = vmatpush.msra.mxu0 0.0
  %203 = vmatpush.msra.mxu0 0.0
  %204 = vmatpush.msra.mxu0 0.0
  %205 = vmatpush.msra.mxu0 0.0
  %206 = vmatpush.msra.mxu0 0.0
  %207 = vmatpush.msra.mxu0 %v19
  %208 = vmatpush.msra.mxu0 %v18
  %209 = vmatpush.msra.mxu0 %v17
  %210 = vmatpush.msra.mxu0 %v16
  %211 = vmatmul.f32.gmra.mxu0 %v193
  %v212 = vpop.f32.mrf.mxu0
  %v213 = vadd.f32 0.0, %v212
  %214 = vdwg.mxu0
  %v215 = vadd.f32 %v86, %v213
  %v216 = vtanh.pop %v215
  %v218 = vsel %vm91, %v216, 0
  %220 = vmatpush.msra.mxu0 0.0
  %221 = vmatpush.msra.mxu0 0.0
  %222 = vmatpush.msra.mxu0 0.0
  %223 = vmatpush.msra.mxu0 0.0
  %224 = vmatpush.msra.mxu0 0.0
  %225 = vmatpush.msra.mxu0 0.0
  %226 = vmatpush.msra.mxu0 0.0
  %227 = vmatpush.msra.mxu0 0.0
  %228 = vmatpush.msra.mxu0 0.0
  %229 = vmatpush.msra.mxu0 0.0
  %230 = vmatpush.msra.mxu0 0.0
  %231 = vmatpush.msra.mxu0 0.0
  %232 = vmatpush.msra.mxu0 %v19
  %233 = vmatpush.msra.mxu0 %v18
  %234 = vmatpush.msra.mxu0 %v17
  %235 = vmatpush.msra.mxu0 %v16
  %236 = vmatmul.f32.gmra.mxu0 %v218
  %v237 = vpop.f32.mrf.mxu0
  %v238 = vadd.f32 0.0, %v237
  %239 = vdwg.mxu0
  %v240 = vadd.f32 %v87, %v238
  %v241 = vtanh.pop %v240
  %v243 = vsel %vm91, %v241, 0
  %245 = vmatpush.msra.mxu0 0.0
  %246 = vmatpush.msra.mxu0 0.0
  %247 = vmatpush.msra.mxu0 0.0
  %248 = vmatpush.msra.mxu0 0.0
  %249 = vmatpush.msra.mxu0 0.0
  %250 = vmatpush.msra.mxu0 0.0
  %251 = vmatpush.msra.mxu0 0.0
  %252 = vmatpush.msra.mxu0 0.0
  %253 = vmatpush.msra.mxu0 0.0
  %254 = vmatpush.msra.mxu0 0.0
  %255 = vmatpush.msra.mxu0 0.0
  %256 = vmatpush.msra.mxu0 0.0
  %257 = vmatpush.msra.mxu0 %v19
  %258 = vmatpush.msra.mxu0 %v18
  %259 = vmatpush.msra.mxu0 %v17
  %260 = vmatpush.msra.mxu0 %v16
  %261 = vmatmul.f32.gmra.mxu0 %v243
  %v262 = vpop.f32.mrf.mxu0
  %v263 = vadd.f32 0.0, %v262
  %264 = vdwg.mxu0
  %v265 = vadd.f32 %v88, %v263
  %v266 = vtanh.pop %v265
  %v268 = vsel %vm91, %v266, 0
  %270 = vmatpush.msra.mxu0 0.0
  %271 = vmatpush.msra.mxu0 0.0
  %272 = vmatpush.msra.mxu0 0.0
  %273 = vmatpush.msra.mxu0 0.0
  %274 = vmatpush.msra.mxu0 0.0
  %275 = vmatpush.msra.mxu0 0.0
  %276 = vmatpush.msra.mxu0 0.0
  %277 = vmatpush.msra.mxu0 0.0
  %278 = vmatpush.msra.mxu0 0.0
  %279 = vmatpush.msra.mxu0 0.0
  %280 = vmatpush.msra.mxu0 0.0
  %281 = vmatpush.msra.mxu0 0.0
  %282 = vmatpush.msra.mxu0 %v19
  %283 = vmatpush.msra.mxu0 %v18
  %284 = vmatpush.msra.mxu0 %v17
  %285 = vmatpush.msra.mxu0 %v16
  %286 = vmatmul.f32.gmra.mxu0 %v268
  %v287 = vpop.f32.mrf.mxu0
  %v288 = vadd.f32 0.0, %v287
  %289 = vdwg.mxu0
  %v290 = vadd.f32 %v89, %v288
  %v291 = vtanh.pop %v290
  %vm292 = vcmask 254976
  %293 = vst.msk [vmem:[%s3] sm:$0x3] %vm292, %v116
  %294 = vst.msk [vmem:[%s3 + $0x2] sm:$0x3] %vm292, %v141
  %295 = vst.msk [vmem:[%s3 + $0x4] sm:$0x3] %vm292, %v166
  %296 = vst.msk [vmem:[%s3 + $0x6] sm:$0x3] %vm292, %v191
  %297 = vst.msk [vmem:[%s3 + $0x8] sm:$0x3] %vm292, %v216
  %298 = vst.msk [vmem:[%s3 + $0xa] sm:$0x3] %vm292, %v241
  %299 = vst.msk [vmem:[%s3 + $0xc] sm:$0x3] %vm292, %v266
  %300 = vst.msk [vmem:[%s3 + $0xe] sm:$0x3] %vm292, %v291
  %v301 = vperm.slane %v22, 0
  %v302 = vmul.f32 %v116, %v301
  %v303 = vmul.f32 %v141, %v301
  %v304 = vmul.f32 %v166, %v301
  %v305 = vmul.f32 %v191, %v301
  %v306 = vmul.f32 %v216, %v301
  %v307 = vmul.f32 %v241, %v301
  %v308 = vmul.f32 %v266, %v301
  %v309 = vmul.f32 %v291, %v301
  %v310 = vsel %vm292, %v302, 0.0
  %311 = vadd.xlane.f32.xlu0 %v310
  %v312 = vpop.xlane.xlu0 %311
  %v313 = vsel %vm292, %v303, 0.0
  %314 = vadd.xlane.f32.xlu0 %v313
  %v315 = vpop.xlane.xlu0 %314
  %v316 = vsel %vm292, %v304, 0.0
  %317 = vadd.xlane.f32.xlu0 %v316
  %v318 = vpop.xlane.xlu0 %317
  %v319 = vsel %vm292, %v305, 0.0
  %320 = vadd.xlane.f32.xlu0 %v319
  %v321 = vpop.xlane.xlu0 %320
  %v322 = vsel %vm292, %v306, 0.0
  %323 = vadd.xlane.f32.xlu0 %v322
  %v324 = vpop.xlane.xlu0 %323
  %v325 = vsel %vm292, %v307, 0.0
  %326 = vadd.xlane.f32.xlu0 %v325
  %v327 = vpop.xlane.xlu0 %326
  %v328 = vsel %vm292, %v308, 0.0
  %329 = vadd.xlane.f32.xlu0 %v328
  %v330 = vpop.xlane.xlu0 %329
  %v331 = vsel %vm292, %v309, 0.0
  %332 = vadd.xlane.f32.xlu0 %v331
  %v333 = vpop.xlane.xlu0 %332
  %s335 = vtos %v23
  %v336 = vstv %s335
  %v338 = vadd.f32 %v312, %v336
  %v339 = vadd.f32 %v315, %v336
  %v340 = vadd.f32 %v318, %v336
  %v341 = vadd.f32 %v321, %v336
  %v342 = vadd.f32 %v324, %v336
  %v343 = vadd.f32 %v327, %v336
  %v344 = vadd.f32 %v330, %v336
  %v345 = vadd.f32 %v333, %v336
  %v354 = vlaneseq
  %v355 = vand.u32 %v354, 127
  %v356 = vperm.slane %v338, %v355
  %v357 = vperm.slane %v339, %v355
  %v358 = vperm.slane %v340, %v355
  %v359 = vperm.slane %v341, %v355
  %v360 = vperm.slane %v342, %v355
  %v361 = vperm.slane %v343, %v355
  %v362 = vperm.slane %v344, %v355
  %v363 = vperm.slane %v345, %v355
  %vm364 = vcmask 1041409
  %v365 = vsel %vm364, %v357, %v356
  %vm366 = vcmask 1042434
  %v367 = vsel %vm366, %v358, %v365
  %vm368 = vcmask 1043459
  %v369 = vsel %vm368, %v359, %v367
  %vm370 = vcmask 1044484
  %v371 = vsel %vm370, %v360, %v369
  %vm372 = vcmask 1045509
  %v373 = vsel %vm372, %v361, %v371
  %vm374 = vcmask 1046534
  %v375 = vsel %vm374, %v362, %v373
  %vm376 = vcmask 1047559
  %v377 = vsel %vm376, %v363, %v375
  %vm379 = vcmask 15360
  %380 = vst.msk [vmem:[%s4] sm:$0xff] %vm379, %v377
  // Predicated region
  $region14: #{rnn_forward.1} parent=0 // pred_check
    _
  $region15: #{rnn_forward.1} parent=0 // pred_check_branch
    %382 = sbr.rel (0) target = $region17
  $region16: #{rnn_forward.1} parent=0 // pred_region
    _
  $region17: #{rnn_forward.1} parent=0 // pred_fallthru
    _
  // Predicated region
  $region18: #{rnn_forward.1} parent=0 // pred_check
    _
  $region19: #{rnn_forward.1} parent=0 // pred_check_branch
    %384 = sbr.rel (0) target = $region21
  $region20: #{rnn_forward.1} parent=0 // pred_region
    _
  $region21: #{rnn_forward.1} parent=0 // pred_fallthru
    _
  // Predicated region
  $region22: #{rnn_forward.1} parent=0 // pred_check
    _
  $region23: #{rnn_forward.1} parent=0 // pred_check_branch
    %386 = sbr.rel (0) target = $region25
  $region24: #{rnn_forward.1} parent=0 // pred_region
    _
  $region25: #{rnn_forward.1} parent=0 // pred_fallthru
    _
  // Predicated region
  $region26: #{rnn_forward.1} parent=0 // pred_check
    _
  $region27: #{rnn_forward.1} parent=0 // pred_check_branch
    %388 = sbr.rel (0) target = $region29
  $region28: #{rnn_forward.1} parent=0 // pred_region
    _
  $region29: #{rnn_forward.1} parent=0 // pred_fallthru
    _

</llo_original>
